<compile_context>
chip_gen: v6e
topology: v6e:2x2x1
jax: 0.10.0
libtpu: 0.0.40
codegen_flags: <defaults>
</compile_context>

<pallas_src>
import functools

import jax
import jax.numpy as jnp
from jax.experimental import pallas as pl
from jax.experimental.pallas import tpu as pltpu

GAMMA = 2.0
IGNORE_INDEX = 255

_MiB = 1024 * 1024


def _vmem_capacity_bytes():
    """Per-core VMEM capacity; conservative 64 MiB (v7x) fallback if the query fails."""
    try:
        info = pltpu.get_tpu_info()
        cap = getattr(info, "vmem_capacity_bytes", None)
        if cap:
            return int(cap)
    except Exception:
        pass
    return 64 * _MiB


def _choose_lane_tile(n_pixels, num_classes, itemsize, vmem_cap):
    """Pixels per grid step (lane axis). Targets ~8-16 MiB of logits per step so the
    ~0.35us per-step overhead is <5%, while keeping double-buffered logits + targets
    plus the int32 class-iota scratch inside a ~70% VMEM budget."""
    target_block = (16 * _MiB) if vmem_cap >= 96 * _MiB else (8 * _MiB)
    budget = int(vmem_cap * 0.7)
    # VMEM bytes per pixel of lane-tile:
    #   2x double-buffered logits + 2x double-buffered int32 targets + int32 iota scratch
    per_pixel = 2 * num_classes * itemsize + 2 * 4 + num_classes * 4
    lt = min(target_block // max(1, num_classes * itemsize),
             max(128, budget // per_pixel))
    lt = max(128, (lt // 128) * 128)
    if n_pixels <= lt:
        return n_pixels          # block == full pixel dim: always a legal block shape
    return lt                    # multiple of 128; tail handled via IGNORE-padded targets


def _focal_partial_kernel(x_ref, t_ref, out_ref, iota_ref):
    # x_ref: (C, L) input dtype   t_ref: (1, L) int32
    # out_ref: (1, 128) f32 accumulator (resident across the reduction axis j)
    # iota_ref: (C, L) int32 scratch holding the class indices (filled once per pass)
    j = pl.program_id(2)

    @pl.when(j == 0)
    def _():
        out_ref[...] = jnp.zeros_like(out_ref)
        iota_ref[...] = jax.lax.broadcasted_iota(jnp.int32, iota_ref.shape, 0)

    x = x_ref[...]                                   # (C, L) native dtype (f32 or bf16)
    t = t_ref[...]                                   # (1, L) int32 labels (255 = ignore/pad)

    # per-pixel cross entropy: logsumexp over classes (sublane reduce) - picked logit.
    # max / subtract / class-pick stay in the input dtype; exp/log/accumulate in f32.
    m = jnp.max(x, axis=0, keepdims=True)                                  # (1, L)
    e = jnp.exp((x - m).astype(jnp.float32))                               # (C, L) f32
    lse = m.astype(jnp.float32) + jnp.log(jnp.sum(e, axis=0, keepdims=True))

    eq = iota_ref[...] == t                                                # (C, L) one-hot
    picked = jnp.sum(jnp.where(eq, x, jnp.zeros_like(x)),
                     axis=0, keepdims=True).astype(jnp.float32)            # (1, L)

    valid = t != IGNORE_INDEX                       # padded tail pixels are IGNORE_INDEX
    ce = jnp.where(valid, lse - picked, 0.0)                               # (1, L) f32

    out_ref[...] += jnp.sum(ce, axis=1, keepdims=True)   # (1,1) broadcast-add into (1,128)


def focal_loss(logits_nchw, target_nhw):
    """logits_nchw: (N, C, H, W) float (f32 or bf16); target_nhw: (N, H, W) int (255 = ignore)."""
    N, C, H, W = logits_nchw.shape
    P = H * W
    itemsize = jnp.dtype(logits_nchw.dtype).itemsize

    vmem_cap = _vmem_capacity_bytes()
    lane_tile = _choose_lane_tile(P, C, itemsize, vmem_cap)
    n_tiles = pl.cdiv(P, lane_tile)

    # Split the pixel dim across a second "parallel" axis when N is odd (e.g. N==1 eval)
    # so a 2-TensorCore chip (v7x) doesn't idle half the chip. No-op on single-TC parts.
    n_splits = 2 if (N % 2 == 1 and n_tiles >= 2) else 1
    ntps = pl.cdiv(n_tiles, n_splits)            # tiles per split
    last_blk = n_tiles - 1

    x = logits_nchw.reshape(N, C, P)             # free reshape, native layout/dtype
    t = target_nhw.reshape(N, 1, P).astype(jnp.int32)
    P_pad = n_splits * ntps * lane_tile
    if P_pad != P:
        # Tiny copy (targets only) so the kernel needs no in-bounds mask: padded pixels
        # carry IGNORE_INDEX and contribute exactly zero.
        t = jnp.pad(t, ((0, 0), (0, 0), (0, P_pad - P)), constant_values=IGNORE_INDEX)

    def x_map(n, s, j):
        # Clamp so the duplicated "coverage" tiles of the last split never DMA fully OOB;
        # their targets are IGNORE_INDEX so they contribute nothing.
        return (n, 0, jnp.minimum(s * ntps + j, last_blk))

    def t_map(n, s, j):
        return (n, 0, s * ntps + j)              # targets are padded: always in bounds

    def o_map(n, s, j):
        return (n, s, 0)

    # VMEM footprint (double-buffered inputs + iota scratch + small output block).
    footprint = (2 * C * lane_tile * itemsize
                 + 2 * lane_tile * 4
                 + C * lane_tile * 4
                 + 4 * 128 * 4)
    vmem_limit = min(int(vmem_cap * 0.9), footprint + 8 * _MiB)

    cost = pl.CostEstimate(
        flops=int(6 * N * C * P + 10 * N * P),
        transcendentals=int(N * C * P + N * P),
        bytes_accessed=int(N * C * P * itemsize + N * P_pad * 4 + N * n_splits * 128 * 4),
    )

    partials = pl.pallas_call(
        _focal_partial_kernel,
        out_shape=jax.ShapeDtypeStruct((N, n_splits, 128), jnp.float32),
        grid_spec=pltpu.PrefetchScalarGridSpec(
            num_scalar_prefetch=0,
            grid=(N, n_splits, ntps),
            in_specs=[
                pl.BlockSpec((pl.Squeezed(), C, lane_tile), x_map),
                pl.BlockSpec((pl.Squeezed(), 1, lane_tile), t_map),
            ],
            out_specs=pl.BlockSpec((pl.Squeezed(), 1, 128), o_map),
            scratch_shapes=[
                pltpu.VMEM((C, lane_tile), jnp.int32),   # hoisted class-index iota
            ],
        ),
        compiler_params=pltpu.CompilerParams(
            dimension_semantics=("parallel", "parallel", "arbitrary"),
            vmem_limit_bytes=vmem_limit,
        ),
        cost_estimate=cost,
    )(x, t)

    # Tiny epilogue in XLA: combine partial CE sums, count valid pixels, focal transform.
    total_ce = jnp.sum(partials[..., 0])
    total_valid = jnp.sum((target_nhw != IGNORE_INDEX).astype(jnp.float32))
    logpt = total_ce / total_valid               # NaN if every pixel ignored (matches PyTorch)
    pt = jnp.exp(-logpt)
    return (1.0 - pt) ** GAMMA * logpt


def focal_loss_ref(logits_nchw, target_nhw):
    """Pure-JAX reference of the PyTorch forward."""
    N, C, H, W = logits_nchw.shape
    x = jnp.transpose(logits_nchw, (0, 2, 3, 1)).reshape(-1, C).astype(jnp.float32)
    t = target_nhw.reshape(-1).astype(jnp.int32)
    valid = t != IGNORE_INDEX
    lse = jax.nn.logsumexp(x, axis=1)
    picked = jnp.take_along_axis(x, jnp.where(valid, t, 0)[:, None], axis=1)[:, 0]
    ce = jnp.where(valid, lse - picked, 0.0)
    logpt = jnp.sum(ce) / jnp.sum(valid)
    pt = jnp.exp(-logpt)
    return (1.0 - pt) ** GAMMA * logpt


if __name__ == "__main__":
    key = jax.random.PRNGKey(0)
    k1, k2, k3 = jax.random.split(key, 3)

    N, C, H, W = 2, 4, 16, 16
    logits = jax.random.normal(k1, (N, C, H, W), dtype=jnp.float32)
    target = jax.random.randint(k2, (N, H, W), 0, C, dtype=jnp.int32)
    # sprinkle some ignored pixels (ignore_index=255)
    ignore_mask = jax.random.uniform(k3, (N, H, W)) < 0.1
    target = jnp.where(ignore_mask, IGNORE_INDEX, target)

    loss = focal_loss(logits, target)
    jax.block_until_ready(loss)

    ref = focal_loss_ref(logits, target)
    assert jnp.allclose(loss, ref, rtol=1e-5, atol=1e-6), (loss, ref)

    print("KERNEL_OK")
</pallas_src>

<mosaic_0001>
module attributes {stable_mosaic.version = 11 : i64} {
  func.func @_focal_partial_kernel(%arg0: i32, %arg1: i32, %arg2: i32, %arg3: memref<1x4x256xf32, #tpu.memory_space<vmem>>, %arg4: memref<1x1x256xi32, #tpu.memory_space<vmem>>, %arg5: memref<1x1x128xf32, #tpu.memory_space<vmem>>, %arg6: memref<4x256xi32, #tpu.memory_space<vmem>>) attributes {dimension_semantics = [#tpu.dimension_semantics<parallel>, #tpu.dimension_semantics<parallel>, #tpu.dimension_semantics<arbitrary>], iteration_bounds = array<i64: 2, 1, 1>, scalar_prefetch = 0 : i64, scratch_operands = 1 : i64, tpu.core_type = #tpu.core_type<tc>, window_params = [{transform_indices = @transform_0, window_bounds = array<i64: 1, 4, 256>}, {transform_indices = @transform_1, window_bounds = array<i64: 1, 1, 256>}, {transform_indices = @transform_2, window_bounds = array<i64: 1, 1, 128>}]} {
    %c0_i32 = arith.constant 0 : i32
    %0 = arith.cmpi eq, %arg2, %c0_i32 : i32
    %1 = arith.extui %0 : i1 to i32
    %c0_i32_0 = arith.constant 0 : i32
    %2 = arith.cmpi ne, %1, %c0_i32_0 : i32
    scf.if %2 {
      %cst_19 = arith.constant 0.000000e+00 : f32
      %37 = vector.broadcast %cst_19 : f32 to vector<1x128xf32>
      %c0_20 = arith.constant 0 : index
      %c0_21 = arith.constant 0 : index
      %c0_22 = arith.constant 0 : index
      %38 = vector.load %arg5[%c0_20, %c0_21, %c0_22] : memref<1x1x128xf32, #tpu.memory_space<vmem>>, vector<1x1x128xf32>
      %39 = vector.shape_cast %38 : vector<1x1x128xf32> to vector<1x128xf32>
      %40 = vector.shape_cast %37 : vector<1x128xf32> to vector<1x1x128xf32>
      tpu.vector_store %arg5[%c0_20, %c0_21, %c0_22], %40 {strides = array<i32>} : memref<1x1x128xf32, #tpu.memory_space<vmem>>, vector<1x1x128xf32>,
      %41 = tpu.iota {dimensions = array<i32: 0>} : vector<4x256xi32>
      %c0_23 = arith.constant 0 : index
      %c0_24 = arith.constant 0 : index
      %42 = vector.load %arg6[%c0_23, %c0_24] : memref<4x256xi32, #tpu.memory_space<vmem>>, vector<4x256xi32>
      tpu.vector_store %arg6[%c0_23, %c0_24], %41 {strides = array<i32>} : memref<4x256xi32, #tpu.memory_space<vmem>>, vector<4x256xi32>,
    } else {
    }
    %c0 = arith.constant 0 : index
    %c0_1 = arith.constant 0 : index
    %c0_2 = arith.constant 0 : index
    %3 = vector.load %arg3[%c0, %c0_1, %c0_2] : memref<1x4x256xf32, #tpu.memory_space<vmem>>, vector<1x4x256xf32>
    %4 = vector.shape_cast %3 : vector<1x4x256xf32> to vector<4x256xf32>
    %c0_3 = arith.constant 0 : index
    %c0_4 = arith.constant 0 : index
    %c0_5 = arith.constant 0 : index
    %5 = vector.load %arg4[%c0_3, %c0_4, %c0_5] : memref<1x1x256xi32, #tpu.memory_space<vmem>>, vector<1x1x256xi32>
    %6 = vector.shape_cast %5 : vector<1x1x256xi32> to vector<1x256xi32>
    %cst = arith.constant dense<0xFF800000> : vector<256xf32>
    %7 = vector.multi_reduction <maximumf>, %4, %cst [0] : vector<4x256xf32> to vector<256xf32>
    %8 = vector.shape_cast %7 : vector<256xf32> to vector<1x256xf32>
    %9 = vector.broadcast %8 : vector<1x256xf32> to vector<4x256xf32>
    %10 = arith.subf %4, %9 : vector<4x256xf32>
    %11 = math.exp %10 : vector<4x256xf32>
    %cst_6 = arith.constant dense<0.000000e+00> : vector<256xf32>
    %12 = vector.multi_reduction <add>, %11, %cst_6 [0] : vector<4x256xf32> to vector<256xf32>
    %13 = vector.shape_cast %12 : vector<256xf32> to vector<1x256xf32>
    %14 = math.log %13 : vector<1x256xf32>
    %15 = arith.addf %8, %14 : vector<1x256xf32>
    %c0_7 = arith.constant 0 : index
    %c0_8 = arith.constant 0 : index
    %16 = vector.load %arg6[%c0_7, %c0_8] : memref<4x256xi32, #tpu.memory_space<vmem>>, vector<4x256xi32>
    %17 = vector.broadcast %6 : vector<1x256xi32> to vector<4x256xi32>
    %18 = arith.cmpi eq, %16, %17 : vector<4x256xi32>
    %cst_9 = arith.constant 0.000000e+00 : f32
    %19 = vector.broadcast %cst_9 : f32 to vector<4x256xf32>
    %20 = arith.select %18, %4, %19 : vector<4x256xi1>, vector<4x256xf32>
    %cst_10 = arith.constant dense<0.000000e+00> : vector<256xf32>
    %21 = vector.multi_reduction <add>, %20, %cst_10 [0] : vector<4x256xf32> to vector<256xf32>
    %22 = vector.shape_cast %21 : vector<256xf32> to vector<1x256xf32>
    %c255_i32 = arith.constant 255 : i32
    %23 = vector.broadcast %c255_i32 : i32 to vector<1x256xi32>
    %24 = arith.cmpi ne, %6, %23 : vector<1x256xi32>
    %25 = arith.subf %15, %22 : vector<1x256xf32>
    %cst_11 = arith.constant 0.000000e+00 : f32
    %26 = vector.broadcast %cst_11 : f32 to vector<1x256xf32>
    %27 = arith.select %24, %25, %26 : vector<1x256xi1>, vector<1x256xf32>
    %c0_12 = arith.constant 0 : index
    %c0_13 = arith.constant 0 : index
    %c0_14 = arith.constant 0 : index
    %28 = vector.load %arg5[%c0_12, %c0_13, %c0_14] : memref<1x1x128xf32, #tpu.memory_space<vmem>>, vector<1x1x128xf32>
    %29 = vector.shape_cast %28 : vector<1x1x128xf32> to vector<1x128xf32>
    %cst_15 = arith.constant dense<0.000000e+00> : vector<1xf32>
    %30 = vector.multi_reduction <add>, %27, %cst_15 [1] : vector<1x256xf32> to vector<1xf32>
    %31 = vector.shape_cast %30 : vector<1xf32> to vector<1x1xf32>
    %32 = vector.broadcast %31 : vector<1x1xf32> to vector<1x128xf32>
    %33 = arith.addf %29, %32 : vector<1x128xf32>
    %c0_16 = arith.constant 0 : index
    %c0_17 = arith.constant 0 : index
    %c0_18 = arith.constant 0 : index
    %34 = vector.load %arg5[%c0_16, %c0_17, %c0_18] : memref<1x1x128xf32, #tpu.memory_space<vmem>>, vector<1x1x128xf32>
    %35 = vector.shape_cast %34 : vector<1x1x128xf32> to vector<1x128xf32>
    %36 = vector.shape_cast %33 : vector<1x128xf32> to vector<1x1x128xf32>
    tpu.vector_store %arg5[%c0_16, %c0_17, %c0_18], %36 {strides = array<i32>} : memref<1x1x128xf32, #tpu.memory_space<vmem>>, vector<1x1x128xf32>,
    return
  }
  func.func @transform_0(%arg0: i32, %arg1: i32, %arg2: i32) -> (i32, i32, i32) {
    %c1_i32 = arith.constant 1 : i32
    %0 = arith.muli %arg1, %c1_i32 : i32
    %1 = arith.addi %0, %arg2 : i32
    %c0_i32 = arith.constant 0 : i32
    %2 = arith.minsi %1, %c0_i32 : i32
    %c0_i32_0 = arith.constant 0 : i32
    %c0_i32_1 = arith.constant 0 : i32
    return %arg0, %c0_i32_0, %2 : i32, i32, i32
  }
  func.func @transform_1(%arg0: i32, %arg1: i32, %arg2: i32) -> (i32, i32, i32) {
    %c1_i32 = arith.constant 1 : i32
    %0 = arith.muli %arg1, %c1_i32 : i32
    %1 = arith.addi %0, %arg2 : i32
    %c0_i32 = arith.constant 0 : i32
    %c0_i32_0 = arith.constant 0 : i32
    return %arg0, %c0_i32, %1 : i32, i32, i32
  }
  func.func @transform_2(%arg0: i32, %arg1: i32, %arg2: i32) -> (i32, i32, i32) {
    %c0_i32 = arith.constant 0 : i32
    %c0_i32_0 = arith.constant 0 : i32
    return %arg0, %arg1, %c0_i32 : i32, i32, i32
  }
}

</mosaic_0001>

<llo_original>
// kernel: tpu_custom_call.1
$region0: #{tpu_custom_call.1}
  #allocation0 [shape = 'u32[]', space=smem, size = 0x4, offset = 0x4, fixed_abs, tag = 'smem constant byte address 0x4 - core index']
  #allocation1 [shape = 'u32[144,128]{1,0:T(1,128)}', space=vmem, size = 0x12000, scoped, tag = 'internal scratch']
  #allocation2 [shape = 's32[4,256]{1,0:T(4,128)}', space=vmem, size = 0x1000, scoped, tag = 'scratch operand']
  %s0 = inlined_call_operand.hbm [shape: f32[2,4,256], index: 0, kind: input, shape index: {}]
  %s1 = inlined_call_operand.hbm [shape: s32[2,1,256], index: 1, kind: input, shape index: {}]
  %s2 = inlined_call_operand.hbm [shape: f32[2,1,128], index: 2, kind: output, shape index: {}]
  %s3 = sld [smem:[#allocation0]]
  $region53: #{tpu_custom_call.1} parent=0
    _
  %s5 = ssub.s32 1, %s3
  %s6 = scalar_select 0, %s5, %s3
  $region1: #{tpu_custom_call.1} parent=0
    #allocation3 [shape = 'u8[8192]{0}', space=vmem, size = 0x2000, scoped, tag = 'input window, operand 0']
    #allocation4 [shape = 's32[2]{0}', space=sflag, size = 0x8, scoped, tag = 'scoped memory for tpu_custom_call.1']
    #allocation5 [shape = 's32[2]{0}', space=sflag, size = 0x8, scoped, tag = 'scoped memory for tpu_custom_call.1']
    #allocation6 [shape = 'u8[2048]{0}', space=vmem, size = 0x800, scoped, tag = 'input window, operand 1']
    #allocation7 [shape = 's32[2]{0}', space=sflag, size = 0x8, scoped, tag = 'scoped memory for tpu_custom_call.1']
    #allocation8 [shape = 'u8[1024]{0}', space=vmem, size = 0x400, scoped, tag = 'output window, operand 0']
    %7 = vsyncpa [#allocation4], 0
    %s8 = scalar_lea.sflag [#allocation4], 1
    %9 = vsyncpa %s8, 0
    %10 = vsyncpa [#allocation7], 0
    %s11 = scalar_lea.sflag [#allocation7], 1
    %12 = vsyncpa %s11, 0
    %13 = vsyncpa [#allocation5], 0
    %s14 = scalar_lea.sflag [#allocation5], 1
    %15 = vsyncpa %s14, 0
    loop: start=0, step=1, limit=4
    $region2: #{tpu_custom_call.1} parent=1 // loop_pre_header
      _
    $region3: #{tpu_custom_call.1} parent=1 // loop_header
      %s17 = sphi 0, %s21
      %p18 = scmp.ge.s32.totalorder %s17, 4
      %s24 = sphi 0, %s43
      %s25 = sphi 0, %s39
      %s26 = sphi 0, %s35
      %s27 = sphi 0, %s24
      %s28 = sphi 0, %s25
      %s29 = sphi 0, %s26
      %s30 = sphi 0, %s27
      %s31 = sphi 0, %s28
      %s32 = sphi 0, %s29
      %s54 = sphi 0, %s56
      %s57 = sphi 0, %s54
      %s58 = sphi 0, %s57
      %s74 = sphi 0, %s58
      %s84 = sphi 0, %s86
      %s87 = sphi 0, %s84
      %s88 = sphi 0, %s87
      %s104 = sphi 0, %s88
      %s112 = sphi 0, %s114
      %s115 = sphi 0, %s112
      %s116 = sphi 0, %s115
      %s132 = sphi 0, %s116
    $region4: #{tpu_custom_call.1} parent=1 // loop_header_branch
      %20 = sbr.rel (%p18) target = $region8
    $region5: #{tpu_custom_call.1} parent=1 // loop_body
      %s22 = ssub.s32 %s17, 1
      %s23 = ssub.s32 %s17, 2
      %s33 = sadd.s32 1, %s26
      %p34 = scmp.ge.s32.totalorder %s33, 1
      %s35 = scalar_select %p34, 0, %s33
      %s36 = sadd.s32 1, %s25
      %s37 = scalar_select %p34, %s36, %s25
      %p38 = scmp.ge.s32.totalorder %s37, 1
      %s39 = scalar_select %p38, 0, %s37
      %s40 = sadd.s32 1, %s24
      %s41 = scalar_select %p38, %s40, %s24
      %p42 = scmp.ge.s32.totalorder %s41, 2
      %s43 = scalar_select %p42, 0, %s41
      %s44 = sadd.s32 %s25, %s26
      %p45 = scmp.lt.s32.totalorder %s44, 0
      %s46 = scalar_select %p45, %s44, 0
      %s47 = sadd.s32 %s39, %s35
      %p48 = scmp.lt.s32.totalorder %s47, 0
      %s49 = scalar_select %p48, %s47, 0
      %s50 = ssub.s32 %s24, %s43
      %s51 = ssub.s32 %s46, %s49
      %s52 = sor.u32 %s50, %s51
      %p53 = scmp.eq.s32.totalorder %s52, 0
      %s55 = sadd.s32 %s54, 1
      %s56 = scalar_select %p53, %s54, %s55
      %p59 = pneg %p53
      %p60 = scmp.eq.s32.totalorder %s17, 1
      %p61 = por %p59, %p60
      %p62 = scmp.ne.s32.totalorder %s54, %s57
      %p63 = scmp.eq.s32.totalorder %s17, 0
      %p64 = por %p62, %p63
      %p65 = scmp.ne.s32.totalorder %s54, %s57
      %p66 = scmp.eq.s32.totalorder %s22, 1
      %p67 = por %p65, %p66
      %p68 = scmp.ne.s32.totalorder %s57, %s58
      %p69 = scmp.eq.s32.totalorder %s22, 0
      %p70 = por %p68, %p69
      %p71 = scmp.ne.s32.totalorder %s57, %s58
      %p72 = scmp.eq.s32.totalorder %s23, 1
      %p73 = por %p71, %p72
      %p75 = scmp.ne.s32.totalorder %s58, %s74
      %p76 = scmp.eq.s32.totalorder %s23, 0
      %p77 = por %p75, %p76
      %s78 = sadd.s32 %s25, %s26
      %s79 = sadd.s32 %s39, %s35
      %s80 = ssub.s32 %s24, %s43
      %s81 = ssub.s32 %s78, %s79
      %s82 = sor.u32 %s80, %s81
      %p83 = scmp.eq.s32.totalorder %s82, 0
      %s85 = sadd.s32 %s84, 1
      %s86 = scalar_select %p83, %s84, %s85
      %p89 = pneg %p83
      %p90 = scmp.eq.s32.totalorder %s17, 1
      %p91 = por %p89, %p90
      %p92 = scmp.ne.s32.totalorder %s84, %s87
      %p93 = scmp.eq.s32.totalorder %s17, 0
      %p94 = por %p92, %p93
      %p95 = scmp.ne.s32.totalorder %s84, %s87
      %p96 = scmp.eq.s32.totalorder %s22, 1
      %p97 = por %p95, %p96
      %p98 = scmp.ne.s32.totalorder %s87, %s88
      %p99 = scmp.eq.s32.totalorder %s22, 0
      %p100 = por %p98, %p99
      %p101 = scmp.ne.s32.totalorder %s87, %s88
      %p102 = scmp.eq.s32.totalorder %s23, 1
      %p103 = por %p101, %p102
      %p105 = scmp.ne.s32.totalorder %s88, %s104
      %p106 = scmp.eq.s32.totalorder %s23, 0
      %p107 = por %p105, %p106
      %s108 = ssub.s32 %s24, %s43
      %s109 = ssub.s32 %s25, %s39
      %s110 = sor.u32 %s108, %s109
      %p111 = scmp.eq.s32.totalorder %s110, 0
      %s113 = sadd.s32 %s112, 1
      %s114 = scalar_select %p111, %s112, %s113
      %p117 = pneg %p111
      %p118 = scmp.eq.s32.totalorder %s17, 1
      %p119 = por %p117, %p118
      %p120 = scmp.ne.s32.totalorder %s112, %s115
      %p121 = scmp.eq.s32.totalorder %s17, 0
      %p122 = por %p120, %p121
      %p123 = scmp.ne.s32.totalorder %s112, %s115
      %p124 = scmp.eq.s32.totalorder %s22, 1
      %p125 = por %p123, %p124
      %p126 = scmp.ne.s32.totalorder %s115, %s116
      %p127 = scmp.eq.s32.totalorder %s22, 0
      %p128 = por %p126, %p127
      %p129 = scmp.ne.s32.totalorder %s115, %s116
      %p130 = scmp.eq.s32.totalorder %s23, 1
      %p131 = por %p129, %p130
      %p133 = scmp.ne.s32.totalorder %s116, %s132
      %p134 = scmp.eq.s32.totalorder %s23, 0
      %p135 = por %p133, %p134
      %p136 = scmp.le.s32.totalorder 1, %s17
      %p137 = scmp.lt.s32.totalorder %s17, 3
      %p138 = pnand %p136, %p137
      %p139 = pneg %p138
      // Predicated region
      $region9: #{tpu_custom_call.1} parent=5 // pred_check
        _
      $region10: #{tpu_custom_call.1} parent=5 // pred_check_branch
        %141 = sbr.rel (%p138) target = $region12
      $region11: #{tpu_custom_call.1} parent=5 // pred_region
        %s142 = ssub.s32 %s17, 1
      $region12: #{tpu_custom_call.1} parent=5 // pred_fallthru
        _
      %p143 = scmp.lt.s32.totalorder %s17, 2
      // Predicated region
      $region13: #{tpu_custom_call.1} parent=5 // pred_check
        %p144 = pneg %p143
      $region14: #{tpu_custom_call.1} parent=5 // pred_check_branch
        %146 = sbr.rel (%p144) target = $region16
      $region15: #{tpu_custom_call.1} parent=5 // pred_region
        // Predicated region
        $region17: #{tpu_custom_call.1} parent=15 // pred_check
          %p147 = pneg %p64
        $region18: #{tpu_custom_call.1} parent=15 // pred_check_branch
          %149 = sbr.rel (%p147) target = $region20
        $region19: #{tpu_custom_call.1} parent=15 // pred_region
          %s150 = sand.u32 %s54, 1
          %s151 = scalar_lea.sflag [#allocation4], %s150
          %s152 = sand.u32 %s54, 1
          %s153 = smul.addr %s152, 8
          %s154 = scalar_lea.vmem [#allocation3], %s153
          %s155 = sadd.s32 %s25, %s26
          %p156 = scmp.lt.s32.totalorder %s155, 0
          %s157 = scalar_select %p156, %s155, 0
          %s158 = smul.u32 2, %s157
          %s160 = ssub.s32 128, 128
          %161 = vsyncadd %s151, %s160
          %s162 = smul.addr %s24, 2
          %s163 = sadd.s32 %s158, %s162
          %s164 = smul.addr %s163, 64
          %s165 = scalar_lea.hbm %s0, %s164
          %s167 = sshll.u32 %s154, 4
          %s168 = int_to_ptr.vmem [resolvable:$true] %s167
          %170 = dma.hbm_to_vmem [thread:$0]  %s165, 128, %s168, %s151
        $region20: #{tpu_custom_call.1} parent=15 // pred_fallthru
          _
        // Predicated region
        $region21: #{tpu_custom_call.1} parent=15 // pred_check
          %p171 = pneg %p94
        $region22: #{tpu_custom_call.1} parent=15 // pred_check_branch
          %173 = sbr.rel (%p171) target = $region24
        $region23: #{tpu_custom_call.1} parent=15 // pred_region
          %s174 = sand.u32 %s84, 1
          %s175 = scalar_lea.sflag [#allocation7], %s174
          %s176 = sand.u32 %s84, 1
          %s177 = smul.addr %s176, 2
          %s178 = scalar_lea.vmem [#allocation6], %s177
          %s179 = sadd.s32 %s25, %s26
          %s180 = smul.u32 2, %s179
          %s182 = ssub.s32 32, 32
          %183 = vsyncadd %s175, %s182
          %s184 = smul.addr %s24, 2
          %s185 = sadd.s32 %s180, %s184
          %s186 = smul.addr %s185, 16
          %s187 = scalar_lea.hbm %s1, %s186
          %s189 = sshll.u32 %s178, 4
          %s190 = int_to_ptr.vmem [resolvable:$true] %s189
          %192 = dma.hbm_to_vmem [thread:$0]  %s187, 32, %s190, %s175
        $region24: #{tpu_custom_call.1} parent=15 // pred_fallthru
          _
      $region16: #{tpu_custom_call.1} parent=5 // pred_fallthru
        _
      %p193 = scmp.le.s32.totalorder 1, %s17
      %p194 = scmp.lt.s32.totalorder %s17, 3
      %p195 = pnand %p193, %p194
      %p196 = pneg %p195
      // Predicated region
      $region25: #{tpu_custom_call.1} parent=5 // pred_check
        _
      $region26: #{tpu_custom_call.1} parent=5 // pred_check_branch
        %198 = sbr.rel (%p195) target = $region28
      $region27: #{tpu_custom_call.1} parent=5 // pred_region
        %s199 = ssub.s32 %s17, 1
        %s200 = sand.u32 %s57, 1
        %s201 = scalar_lea.sflag [#allocation4], %s200
        %s202 = sand.u32 %s57, 1
        %s203 = smul.addr %s202, 8
        %s204 = scalar_lea.vmem [#allocation3], %s203
        // Predicated region
        $region29: #{tpu_custom_call.1} parent=27 // pred_check
          %p205 = pneg %p70
        $region30: #{tpu_custom_call.1} parent=27 // pred_check_branch
          %207 = sbr.rel (%p205) target = $region32
        $region31: #{tpu_custom_call.1} parent=27 // pred_region
          %208 = dma.done %s201, 128
        $region32: #{tpu_custom_call.1} parent=27 // pred_fallthru
          _
        %s209 = sand.u32 %s87, 1
        %s210 = scalar_lea.sflag [#allocation7], %s209
        %s211 = sand.u32 %s87, 1
        %s212 = smul.addr %s211, 2
        %s213 = scalar_lea.vmem [#allocation6], %s212
        // Predicated region
        $region33: #{tpu_custom_call.1} parent=27 // pred_check
          %p214 = pneg %p100
        $region34: #{tpu_custom_call.1} parent=27 // pred_check_branch
          %216 = sbr.rel (%p214) target = $region36
        $region35: #{tpu_custom_call.1} parent=27 // pred_region
          %217 = dma.done %s210, 32
        $region36: #{tpu_custom_call.1} parent=27 // pred_fallthru
          _
        %s218 = sand.u32 %s57, 1
        %s219 = scalar_lea.sflag [#allocation4], %s218
        %s220 = sand.u32 %s57, 1
        %s221 = smul.addr %s220, 8
        %s222 = scalar_lea.vmem [#allocation3], %s221
        %p223 = pneg %p70
        %p224 = pneg %p67
        %s225 = sand.u32 %s87, 1
        %s226 = scalar_lea.sflag [#allocation7], %s225
        %s227 = sand.u32 %s87, 1
        %s228 = smul.addr %s227, 2
        %s229 = scalar_lea.vmem [#allocation6], %s228
        %p230 = pneg %p100
        %p231 = pneg %p97
        %p232 = pneg %p128
        %p233 = pneg %p125
        %s234 = sand.u32 %s115, 1
        %s235 = scalar_lea.sflag [#allocation5], %s234
        %s236 = sand.u32 %s115, 1
        %s237 = scalar_lea.vmem [#allocation8], %s236
        %s238 = sadd.s32 %s28, %s29
        %p239 = scmp.lt.s32.totalorder %s238, 0
        %s240 = scalar_select %p239, %s238, 0
        %s241 = smul.u32 2, %s240
        %s242 = sadd.s32 %s28, %s29
        %s243 = smul.u32 2, %s242
        %p244 = scmp.eq.s32.totalorder %s29, 0
        // Predicated region
        $region37: #{tpu_custom_call.1} parent=27 // pred_check
          %p245 = pneg %p244
        $region38: #{tpu_custom_call.1} parent=27 // pred_check_branch
          %247 = sbr.rel (%p245) target = $region40
        $region39: #{tpu_custom_call.1} parent=27 // pred_region
          %248 = vst [vmem:[%s237] sm:$0x1] 0.0
          %v249 = vlaneseq
          %v250 = vshrl.u32 %v249, 7
          %v252 = vunpack.c.l.s4 839922192
          %v253 = vunpack.c.0.s8 %v252
          %v254 = vlaneseq
          %v255 = vshrl.u32 %v254, 7
          %v256 = vsub.s32 %v253, %v255
          %v257 = vrot.slane %v250, %v256
          %258 = vst [vmem:[#allocation2] sm:$0xff] %v257
        $region40: #{tpu_custom_call.1} parent=27 // pred_fallthru
          _
        %v259 = vld [vmem:[%s204] sm:$0xff]
        %v260 = vld [vmem:[%s213] sm:$0x3]
        %v262 = vcombine.high %v259, %v259
        %vm264 = vcmask 1043456
        %v265 = vsel %vm264, %v259, -inf
        %v266 = vrot.slane %v265, 4
        %v267 = vmax.f32 %v265, %v266
        %v268 = vrot.slane %v267, 2
        %v269 = vmax.f32 %v267, %v268
        %v270 = vrot.slane %v269, 1
        %v271 = vmax.f32 %v269, %v270
        %v272 = vsel %vm264, %v262, -inf
        %v273 = vrot.slane %v272, 4
        %v274 = vmax.f32 %v272, %v273
        %v275 = vrot.slane %v274, 2
        %v276 = vmax.f32 %v274, %v275
        %v277 = vrot.slane %v276, 1
        %v278 = vmax.f32 %v276, %v277
        %v281 = vcombine.low %v271, %v278
        %v283 = vsub.f32 %v259, %v281
        %v284 = vmul.f32 %v283, 1.442695
        %v285 = vpow.pop %v284
        %v287 = vcombine.high %v285, %v285
        %v289 = vsel %vm264, %v285, 0.0
        %v290 = vrot.slane %v289, 4
        %v291 = vadd.f32 %v289, %v290
        %v292 = vrot.slane %v291, 2
        %v293 = vadd.f32 %v291, %v292
        %v294 = vrot.slane %v293, 1
        %v295 = vadd.f32 %v293, %v294
        %v296 = vsel %vm264, %v287, 0.0
        %v297 = vrot.slane %v296, 4
        %v298 = vadd.f32 %v296, %v297
        %v299 = vrot.slane %v298, 2
        %v300 = vadd.f32 %v298, %v299
        %v301 = vrot.slane %v300, 1
        %v302 = vadd.f32 %v300, %v301
        %v303 = vlog2.pop %v295
        %v304 = vmul.f32 %v303, 0.6931472
        %v305 = vlog2.pop %v302
        %v306 = vmul.f32 %v305, 0.6931472
        %v307 = vadd.f32 %v271, %v304
        %v308 = vadd.f32 %v278, %v306
        %v309 = vld [vmem:[#allocation2] sm:$0xff]
        %v310 = vlaneseq
        %v311 = vshrl.u32 %v310, 7
        %v312 = vsub.s32 0, %v311
        %v313 = vrot.slane %v260, %v312
        %v314 = vlaneseq
        %v315 = vshrl.u32 %v314, 7
        %v316 = vsub.s32 1, %v315
        %v317 = vrot.slane %v260, %v316
        %v318 = vcombine.low %v313, %v317
        %vm319 = vcmp.eq.s32.totalorder %v309, %v318
        %v320 = vsel %vm319, %v259, 0.0
        %v322 = vcombine.high %v320, %v320
        %v324 = vsel %vm264, %v320, 0.0
        %v325 = vrot.slane %v324, 4
        %v326 = vadd.f32 %v324, %v325
        %v327 = vrot.slane %v326, 2
        %v328 = vadd.f32 %v326, %v327
        %v329 = vrot.slane %v328, 1
        %v330 = vadd.f32 %v328, %v329
        %v331 = vsel %vm264, %v322, 0.0
        %v332 = vrot.slane %v331, 4
        %v333 = vadd.f32 %v331, %v332
        %v334 = vrot.slane %v333, 2
        %v335 = vadd.f32 %v333, %v334
        %v336 = vrot.slane %v335, 1
        %v337 = vadd.f32 %v335, %v336
        %vm338 = vcmp.ne.s32.totalorder %v260, 255
        %v339 = vsub.f32 %v307, %v330
        %v340 = vsub.f32 %v308, %v337
        %v343 = vcombine.low %v339, %v340
        %v345 = vunpack.c.l.s4 1966171168
        %v346 = vunpack.c.0.s8 %v345
        %v347 = vlaneseq
        %v348 = vshrl.u32 %v347, 7
        %v349 = vsub.s32 %v346, %v348
        %v350 = vrot.slane %v343, %v349
        %v352 = vunpack.c.l.s4 1966171168
        %v353 = vunpack.c.0.s8 %v352
        %v354 = vlaneseq
        %v355 = vshrl.u32 %v354, 7
        %v356 = vsub.s32 %v353, %v355
        %v357 = vrot.slane %v350, %v356
        %v359 = vsel %vm338, %v357, 0.0
        %v360 = vld [vmem:[%s237] sm:$0x1]
        %v362 = vlaneseq
        %v363 = vshrl.u32 %v362, 7
        %v364 = vsub.s32 0, %v363
        %v365 = vrot.slane %v359, %v364
        %v366 = vlaneseq
        %v367 = vshrl.u32 %v366, 7
        %v368 = vsub.s32 1, %v367
        %v369 = vrot.slane %v359, %v368
        %vm372 = vcmask 1040384
        %v373 = vsel %vm372, %v365, 0.0
        %v374 = vsel %vm372, %v369, 0.0
        %v375 = vadd.f32 %v373, %v374
        %376 = vadd.xlane.f32.xlu0 %v375
        %v377 = vpop.xlane.xlu0 %376
        %v378 = vadd.f32 %v360, %v377
        %379 = vst [vmem:[%s237] sm:$0x1] %v378
        %s380 = sand.u32 %s115, 1
        %s381 = scalar_lea.sflag [#allocation5], %s380
        %s382 = sand.u32 %s115, 1
        %s383 = scalar_lea.vmem [#allocation8], %s382
        // Predicated region
        $region41: #{tpu_custom_call.1} parent=27 // pred_check
          %p384 = pneg %p125
        $region42: #{tpu_custom_call.1} parent=27 // pred_check_branch
          %386 = sbr.rel (%p384) target = $region44
        $region43: #{tpu_custom_call.1} parent=27 // pred_region
          %s388 = ssub.s32 16, 16
          %389 = vsyncadd %s381, %s388
          %s390 = sadd.s32 %s28, %s27
          %s391 = smul.addr %s390, 16
          %s392 = scalar_lea.hbm %s2, %s391
          %s394 = sshll.u32 %s383, 4
          %s395 = int_to_ptr.vmem [resolvable:$true] %s394
          %397 = dma.vmem_to_hbm [thread:$0]  %s395, 16, %s392, %s381
        $region44: #{tpu_custom_call.1} parent=27 // pred_fallthru
          _
      $region28: #{tpu_custom_call.1} parent=5 // pred_fallthru
        _
      %p398 = scmp.le.s32.totalorder 2, %s17
      // Predicated region
      $region45: #{tpu_custom_call.1} parent=5 // pred_check
        %p399 = pneg %p398
      $region46: #{tpu_custom_call.1} parent=5 // pred_check_branch
        %401 = sbr.rel (%p399) target = $region48
      $region47: #{tpu_custom_call.1} parent=5 // pred_region
        %s402 = ssub.s32 %s17, 2
        // Predicated region
        $region49: #{tpu_custom_call.1} parent=47 // pred_check
          %p403 = pneg %p131
        $region50: #{tpu_custom_call.1} parent=47 // pred_check_branch
          %405 = sbr.rel (%p403) target = $region52
        $region51: #{tpu_custom_call.1} parent=47 // pred_region
          %s406 = sand.u32 %s116, 1
          %s407 = scalar_lea.sflag [#allocation5], %s406
          %s408 = sand.u32 %s116, 1
          %s409 = scalar_lea.vmem [#allocation8], %s408
          %410 = dma.done %s407, 16
        $region52: #{tpu_custom_call.1} parent=47 // pred_fallthru
          _
      $region48: #{tpu_custom_call.1} parent=5 // pred_fallthru
        _
    $region6: #{tpu_custom_call.1} parent=1 // loop_footer
      %s21 = sadd.s32 1, %s17
    $region7: #{tpu_custom_call.1} parent=1 // loop_footer_branch
      %16 = sbr.rel target = $region3
    $region8: #{tpu_custom_call.1} parent=1 // loop_exit
      _
    %411 = vsyncpa [#allocation4], 1
    %s412 = scalar_lea.sflag [#allocation4], 1
    %413 = vsyncpa %s412, 1
    %414 = vsyncpa [#allocation7], 1
    %s415 = scalar_lea.sflag [#allocation7], 1
    %416 = vsyncpa %s415, 1
    %417 = vsyncpa [#allocation5], 1
    %s418 = scalar_lea.sflag [#allocation5], 1
    %419 = vsyncpa %s418, 1

</llo_original>
